<compile_context>
chip_gen: v6e
topology: v6e:2x2x1
jax: 0.10.0
libtpu: 0.0.40
codegen_flags: <defaults>
</compile_context>

<pallas_src>
import functools

import jax
import jax.numpy as jnp
from jax.experimental import pallas as pl
from jax.experimental.pallas import tpu as pltpu


def _round_up(n, m):
    return ((n + m - 1) // m) * m


def _vmem_limit_bytes():
    # ~75% of physical VMEM: 96 MiB on v5e/v6e (128 MiB), 48 MiB on v7x (64 MiB).
    try:
        info = pltpu.get_tpu_info()
        cap = getattr(info, "vmem_capacity_bytes", None)
        if cap:
            return int(cap) * 3 // 4
    except Exception:
        pass
    return 48 * 1024 * 1024  # conservative fallback, safe on v7x


def _resblock_kernel(x_ref, wc_ref, bc_ref, w2_ref, b2_ref, o_ref, *, d_out_p):
    # Cast activations to the weight compute dtype (bf16) only at the MXU input;
    # x is DMAed in its original dtype so the wrapper never copies/pads it.
    x = x_ref[...].astype(wc_ref.dtype)

    # Fused x-side matmul: [W1 | Wr] -> one MXU pass over x, f32 accumulation.
    hc = jnp.dot(x, wc_ref[...], preferred_element_type=jnp.float32) + bc_ref[...]

    # Main branch: bias-add / ReLU kept in f32 (cheap VPU work, exact on v5e).
    h = jnp.maximum(hc[:, :d_out_p], 0.0)
    h2 = jnp.dot(h.astype(w2_ref.dtype), w2_ref[...],
                 preferred_element_type=jnp.float32) + b2_ref[...]
    h2 = jnp.maximum(h2, 0.0)

    # Residual branch from the fused matmul (static, lane-aligned slice).
    residual = hc[:, d_out_p:]

    o_ref[...] = (h2 + residual).astype(o_ref.dtype)


def prepare_params(params, compute_dtype=jnp.bfloat16):
    """One-time weight prep (do this at parameter-load time, NOT per forward):
    pad output dims to 128 multiples, fuse [W1 | Wr] along N, cast weights to
    bf16; biases stay f32 for the VPU bias-add."""
    d_in, d_out = params["w1"].shape
    d_out_p = _round_up(d_out, 128)

    def pad_w(w, rows, cols):
        return (jnp.zeros((rows, cols), compute_dtype)
                .at[: w.shape[0], : w.shape[1]].set(w.astype(compute_dtype)))

    def pad_b(b, cols):
        return (jnp.zeros((1, cols), jnp.float32)
                .at[0, : b.shape[0]].set(b.astype(jnp.float32)))

    w1 = pad_w(params["w1"], d_in, d_out_p)
    wr = pad_w(params["wr"], d_in, d_out_p)
    wc = jnp.concatenate([w1, wr], axis=1)                      # (d_in, 2*d_out_p)
    bc = jnp.concatenate([pad_b(params["b1"], d_out_p),
                          pad_b(params["br"], d_out_p)], axis=1)  # (1, 2*d_out_p)
    w2 = pad_w(params["w2"], d_out_p, d_out_p)                  # (d_out_p, d_out_p)
    b2 = pad_b(params["b2"], d_out_p)                           # (1, d_out_p)
    return {"wc": wc, "bc": bc, "w2": w2, "b2": b2}


@functools.partial(jax.jit, static_argnames=("d_out", "tile_b"))
def residual_block(x, wc, bc, w2, b2, *, d_out, tile_b=512):
    """x: (B, d_in) float32 (or bf16). wc/bc/w2/b2 from prepare_params()."""
    B, d_in = x.shape
    d_out_p = w2.shape[1]
    assert wc.shape == (d_in, 2 * d_out_p)

    # Batch tiling: no x copy/pad. Partial last tile's OOB rows are dropped.
    if B > tile_b:
        tb = tile_b
    elif B >= 16:
        # Keep >= 2 programs on the 'parallel' axis so both v7x TCs get work.
        tb = _round_up(pl.cdiv(B, 2), 8)
    else:
        tb = max(_round_up(B, 8), 8)
    grid = (pl.cdiv(B, tb),)

    kernel = functools.partial(_resblock_kernel, d_out_p=d_out_p)

    out = pl.pallas_call(
        kernel,
        out_shape=jax.ShapeDtypeStruct((B, d_out_p), jnp.float32),
        grid_spec=pltpu.PrefetchScalarGridSpec(
            num_scalar_prefetch=0,
            grid=grid,
            in_specs=[
                # Activations: tiled along batch, double-buffered by Pallas.
                # Last dim = full array dim, so no 128-multiple requirement.
                pl.BlockSpec((tb, d_in), lambda i: (i, 0)),
                # Weights / biases: VMEM-resident (constant index_map), bf16.
                pl.BlockSpec((d_in, 2 * d_out_p), lambda i: (0, 0)),
                pl.BlockSpec((1, 2 * d_out_p), lambda i: (0, 0)),
                pl.BlockSpec((d_out_p, d_out_p), lambda i: (0, 0)),
                pl.BlockSpec((1, d_out_p), lambda i: (0, 0)),
            ],
            out_specs=pl.BlockSpec((tb, d_out_p), lambda i: (i, 0)),
        ),
        compiler_params=pltpu.CompilerParams(
            dimension_semantics=("parallel",),
            vmem_limit_bytes=_vmem_limit_bytes(),
        ),
    )(x, wc, bc, w2, b2)

    return out if d_out == d_out_p else out[:, :d_out]


def init_params(key, input_dim, output_dim):
    """Deterministic init mimicking nn.Linear default (uniform +/- 1/sqrt(fan_in)).
    Weights stored transposed: (in_features, out_features)."""
    ks = jax.random.split(key, 6)

    def lin(kw, kb, fan_in, fan_out):
        bound = 1.0 / jnp.sqrt(fan_in)
        w = jax.random.uniform(kw, (fan_in, fan_out), jnp.float32, -bound, bound)
        b = jax.random.uniform(kb, (fan_out,), jnp.float32, -bound, bound)
        return w, b

    wr, br = lin(ks[0], ks[1], input_dim, output_dim)
    w1, b1 = lin(ks[2], ks[3], input_dim, output_dim)
    w2, b2 = lin(ks[4], ks[5], output_dim, output_dim)
    return {"wr": wr, "br": br, "w1": w1, "b1": b1, "w2": w2, "b2": b2}


def reference(x, p):
    residual = x @ p["wr"] + p["br"]
    h = jnp.maximum(x @ p["w1"] + p["b1"], 0.0)
    h = jnp.maximum(h @ p["w2"] + p["b2"], 0.0)
    return h + residual


if __name__ == "__main__":
    key = jax.random.PRNGKey(0)
    k_x, k_p = jax.random.split(key)

    batch, input_dim, output_dim = 8, 32, 32  # num_groups=16 divides output_dim
    x = jax.random.normal(k_x, (batch, input_dim), dtype=jnp.float32)
    params = init_params(k_p, input_dim, output_dim)

    # One-time weight padding / [W1|Wr] fusion / bf16 cast (hoisted out of forward).
    prepped = prepare_params(params)

    out = residual_block(x, prepped["wc"], prepped["bc"], prepped["w2"],
                         prepped["b2"], d_out=output_dim)
    out = jax.block_until_ready(out)

    ref = reference(x, params)
    assert out.shape == (batch, output_dim)
    # bf16 MXU operands with f32 accumulation -> looser tolerance than pure f32.
    assert jnp.allclose(out, ref, atol=5e-2, rtol=5e-2), "mismatch vs reference"

    print("KERNEL_OK")
</pallas_src>

<mosaic_0001>
module attributes {stable_mosaic.version = 11 : i64} {
  func.func @_resblock_kernel(%arg0: i32, %arg1: memref<8x32xf32, #tpu.memory_space<vmem>>, %arg2: memref<32x256xbf16, #tpu.memory_space<vmem>>, %arg3: memref<1x256xf32, #tpu.memory_space<vmem>>, %arg4: memref<128x128xbf16, #tpu.memory_space<vmem>>, %arg5: memref<1x128xf32, #tpu.memory_space<vmem>>, %arg6: memref<8x128xf32, #tpu.memory_space<vmem>>) attributes {dimension_semantics = [#tpu.dimension_semantics<parallel>], iteration_bounds = array<i64: 1>, scalar_prefetch = 0 : i64, scratch_operands = 0 : i64, tpu.core_type = #tpu.core_type<tc>, window_params = [{transform_indices = @transform_0, window_bounds = array<i64: 8, 32>}, {pipeline_mode = #tpu.pipeline_mode<synchronous>, transform_indices = @transform_1, window_bounds = array<i64: 32, 256>}, {pipeline_mode = #tpu.pipeline_mode<synchronous>, transform_indices = @transform_2, window_bounds = array<i64: 1, 256>}, {pipeline_mode = #tpu.pipeline_mode<synchronous>, transform_indices = @transform_3, window_bounds = array<i64: 128, 128>}, {pipeline_mode = #tpu.pipeline_mode<synchronous>, transform_indices = @transform_4, window_bounds = array<i64: 1, 128>}, {transform_indices = @transform_5, window_bounds = array<i64: 8, 128>}]} {
    %c0 = arith.constant 0 : index
    %c0_0 = arith.constant 0 : index
    %0 = vector.load %arg1[%c0, %c0_0] : memref<8x32xf32, #tpu.memory_space<vmem>>, vector<8x32xf32>
    %1 = arith.truncf %0 : vector<8x32xf32> to vector<8x32xbf16>
    %c0_1 = arith.constant 0 : index
    %c0_2 = arith.constant 0 : index
    %2 = vector.load %arg2[%c0_1, %c0_2] : memref<32x256xbf16, #tpu.memory_space<vmem>>, vector<32x256xbf16>
    %cst = arith.constant dense<0.000000e+00> : vector<8x256xf32>
    %3 = tpu.matmul %1, %2, %cst {dimension_numbers = #tpu.dot_dimension_numbers<[1], [0], [0], [1], [0, 0, 1, 1], [], []>} : vector<8x32xbf16>, vector<32x256xbf16>, vector<8x256xf32> -> vector<8x256xf32>
    %c0_3 = arith.constant 0 : index
    %c0_4 = arith.constant 0 : index
    %4 = vector.load %arg3[%c0_3, %c0_4] : memref<1x256xf32, #tpu.memory_space<vmem>>, vector<1x256xf32>
    %5 = vector.broadcast %4 : vector<1x256xf32> to vector<8x256xf32>
    %6 = arith.addf %3, %5 : vector<8x256xf32>
    %7 = vector.extract_strided_slice %6 {offsets = [0, 0], sizes = [8, 128], strides = [1, 1]} : vector<8x256xf32> to vector<8x128xf32>
    %cst_5 = arith.constant 0.000000e+00 : f32
    %8 = vector.broadcast %cst_5 : f32 to vector<8x128xf32>
    %9 = arith.maximumf %7, %8 : vector<8x128xf32>
    %10 = arith.truncf %9 : vector<8x128xf32> to vector<8x128xbf16>
    %c0_6 = arith.constant 0 : index
    %c0_7 = arith.constant 0 : index
    %11 = vector.load %arg4[%c0_6, %c0_7] : memref<128x128xbf16, #tpu.memory_space<vmem>>, vector<128x128xbf16>
    %cst_8 = arith.constant dense<0.000000e+00> : vector<8x128xf32>
    %12 = tpu.matmul %10, %11, %cst_8 {dimension_numbers = #tpu.dot_dimension_numbers<[1], [0], [0], [1], [0, 0, 1, 1], [], []>} : vector<8x128xbf16>, vector<128x128xbf16>, vector<8x128xf32> -> vector<8x128xf32>
    %c0_9 = arith.constant 0 : index
    %c0_10 = arith.constant 0 : index
    %13 = vector.load %arg5[%c0_9, %c0_10] : memref<1x128xf32, #tpu.memory_space<vmem>>, vector<1x128xf32>
    %14 = vector.broadcast %13 : vector<1x128xf32> to vector<8x128xf32>
    %15 = arith.addf %12, %14 : vector<8x128xf32>
    %cst_11 = arith.constant 0.000000e+00 : f32
    %16 = vector.broadcast %cst_11 : f32 to vector<8x128xf32>
    %17 = arith.maximumf %15, %16 : vector<8x128xf32>
    %18 = vector.extract_strided_slice %6 {offsets = [0, 128], sizes = [8, 128], strides = [1, 1]} : vector<8x256xf32> to vector<8x128xf32>
    %19 = arith.addf %17, %18 : vector<8x128xf32>
    %c0_12 = arith.constant 0 : index
    %c0_13 = arith.constant 0 : index
    %20 = vector.load %arg6[%c0_12, %c0_13] : memref<8x128xf32, #tpu.memory_space<vmem>>, vector<8x128xf32>
    tpu.vector_store %arg6[%c0_12, %c0_13], %19 {strides = array<i32>} : memref<8x128xf32, #tpu.memory_space<vmem>>, vector<8x128xf32>,
    return
  }
  func.func @transform_0(%arg0: i32) -> (i32, i32) {
    %c0_i32 = arith.constant 0 : i32
    %c0_i32_0 = arith.constant 0 : i32
    return %arg0, %c0_i32 : i32, i32
  }
  func.func @transform_1(%arg0: i32) -> (i32, i32) {
    %c0_i32 = arith.constant 0 : i32
    %c0_i32_0 = arith.constant 0 : i32
    %c0_i32_1 = arith.constant 0 : i32
    return %c0_i32, %c0_i32_0 : i32, i32
  }
  func.func @transform_2(%arg0: i32) -> (i32, i32) {
    %c0_i32 = arith.constant 0 : i32
    %c0_i32_0 = arith.constant 0 : i32
    %c0_i32_1 = arith.constant 0 : i32
    return %c0_i32, %c0_i32_0 : i32, i32
  }
  func.func @transform_3(%arg0: i32) -> (i32, i32) {
    %c0_i32 = arith.constant 0 : i32
    %c0_i32_0 = arith.constant 0 : i32
    %c0_i32_1 = arith.constant 0 : i32
    return %c0_i32, %c0_i32_0 : i32, i32
  }
  func.func @transform_4(%arg0: i32) -> (i32, i32) {
    %c0_i32 = arith.constant 0 : i32
    %c0_i32_0 = arith.constant 0 : i32
    %c0_i32_1 = arith.constant 0 : i32
    return %c0_i32, %c0_i32_0 : i32, i32
  }
  func.func @transform_5(%arg0: i32) -> (i32, i32) {
    %c0_i32 = arith.constant 0 : i32
    %c0_i32_0 = arith.constant 0 : i32
    return %arg0, %c0_i32 : i32, i32
  }
}

</mosaic_0001>

<llo_original>
// kernel: residual_block.1
$region0: #{residual_block.1}
  #allocation0 [shape = 'u32[]', space=smem, size = 0x4, offset = 0x4, fixed_abs, tag = 'smem constant byte address 0x4 - core index']
  #allocation1 [shape = 'u32[144,128]{1,0:T(1,128)}', space=vmem, size = 0x12000, scoped, tag = 'internal scratch']
  %s0 = inlined_call_operand.hbm [shape: f32[8,32], index: 0, kind: input, shape index: {}]
  %s1 = inlined_call_operand.hbm [shape: bf16[32,256], index: 1, kind: input, shape index: {}]
  %s2 = inlined_call_operand.vmem [shape: f32[1,256], index: 2, kind: input, shape index: {}]
  %s3 = inlined_call_operand.hbm [shape: bf16[128,128], index: 3, kind: input, shape index: {}]
  %s4 = inlined_call_operand.vmem [shape: f32[1,128], index: 4, kind: input, shape index: {}]
  %s5 = inlined_call_operand.hbm [shape: f32[8,128], index: 5, kind: output, shape index: {}]
  %s6 = sld [smem:[#allocation0]]
  $region42: #{residual_block.1} parent=0
    _
  %s8 = ssub.s32 1, %s6
  %s9 = scalar_select 0, %s8, %s6
  $region1: #{residual_block.1} parent=0
    #allocation2 [shape = 'u8[4096]{0}', space=vmem, size = 0x1000, scoped, tag = 'input window, operand 0, single buffered']
    #allocation3 [shape = 's32[1]{0}', space=sflag, size = 0x4, scoped, tag = 'scoped memory for residual_block.1']
    #allocation4 [shape = 's32[1]{0}', space=sflag, size = 0x4, scoped, tag = 'scoped memory for residual_block.1']
    #allocation5 [shape = 'u8[16384]{0}', space=vmem, size = 0x4000, scoped, tag = 'input window, operand 1, single buffered']
    #allocation6 [shape = 's32[1]{0}', space=sflag, size = 0x4, scoped, tag = 'scoped memory for residual_block.1']
    #allocation7 [shape = 'u8[32768]{0}', space=vmem, size = 0x8000, scoped, tag = 'input window, operand 3, single buffered']
    #allocation8 [shape = 'u8[4096]{0}', space=vmem, size = 0x1000, scoped, tag = 'output window, operand 0, single buffered']
    %10 = vsyncpa [#allocation3], 0
    %11 = vsyncpa [#allocation6], 0
    %12 = vsyncpa [#allocation4], 0
    // Predicated region
    $region2: #{residual_block.1} parent=1 // pred_check
      _
    $region3: #{residual_block.1} parent=1 // pred_check_branch
      %14 = sbr.rel (0) target = $region5
    $region4: #{residual_block.1} parent=1 // pred_region
      %s16 = ssub.s32 128, 128
      %17 = vsyncadd [#allocation3], %s16
      %s19 = sshll.u32 [#allocation2], 4
      %s20 = int_to_ptr.vmem [resolvable:$true] %s19
      %22 = dma.hbm_to_vmem [thread:$0]  %s0, 128, %s20, [#allocation3]
    $region5: #{residual_block.1} parent=1 // pred_fallthru
      _
    // Predicated region
    $region6: #{residual_block.1} parent=1 // pred_check
      _
    $region7: #{residual_block.1} parent=1 // pred_check_branch
      %24 = sbr.rel (0) target = $region9
    $region8: #{residual_block.1} parent=1 // pred_region
      %s26 = ssub.s32 512, 512
      %27 = vsyncadd [#allocation6], %s26
      %s28 = sshll.u32 [#allocation5], 4
      %s29 = int_to_ptr.vmem [resolvable:$true] %s28
      %34 = dma.hbm_to_vmem [thread:$0]  %s1, 512, %s29, [#allocation6], 128, 128, 8
    $region9: #{residual_block.1} parent=1 // pred_fallthru
      _
    // Predicated region
    $region10: #{residual_block.1} parent=1 // pred_check
      _
    $region11: #{residual_block.1} parent=1 // pred_check_branch
      %36 = sbr.rel (0) target = $region13
    $region12: #{residual_block.1} parent=1 // pred_region
      _
    $region13: #{residual_block.1} parent=1 // pred_fallthru
      _
    // Predicated region
    $region14: #{residual_block.1} parent=1 // pred_check
      _
    $region15: #{residual_block.1} parent=1 // pred_check_branch
      %38 = sbr.rel (0) target = $region17
    $region16: #{residual_block.1} parent=1 // pred_region
      %s40 = ssub.s32 1024, 1024
      %41 = vsyncadd [#allocation6], %s40
      %s42 = sshll.u32 [#allocation7], 4
      %s43 = int_to_ptr.vmem [resolvable:$true] %s42
      %48 = dma.hbm_to_vmem [thread:$0]  %s3, 1024, %s43, [#allocation6], 64, 64, 4
    $region17: #{residual_block.1} parent=1 // pred_fallthru
      _
    // Predicated region
    $region18: #{residual_block.1} parent=1 // pred_check
      _
    $region19: #{residual_block.1} parent=1 // pred_check_branch
      %50 = sbr.rel (0) target = $region21
    $region20: #{residual_block.1} parent=1 // pred_region
      _
    $region21: #{residual_block.1} parent=1 // pred_fallthru
      _
    // Predicated region
    $region22: #{residual_block.1} parent=1 // pred_check
      _
    $region23: #{residual_block.1} parent=1 // pred_check_branch
      %52 = sbr.rel (0) target = $region25
    $region24: #{residual_block.1} parent=1 // pred_region
      %53 = dma.done [#allocation3], 128
    $region25: #{residual_block.1} parent=1 // pred_fallthru
      _
    // Predicated region
    $region26: #{residual_block.1} parent=1 // pred_check
      _
    $region27: #{residual_block.1} parent=1 // pred_check_branch
      %55 = sbr.rel (0) target = $region29
    $region28: #{residual_block.1} parent=1 // pred_region
      %56 = dma.done [#allocation6], 512
    $region29: #{residual_block.1} parent=1 // pred_fallthru
      _
    // Predicated region
    $region30: #{residual_block.1} parent=1 // pred_check
      _
    $region31: #{residual_block.1} parent=1 // pred_check_branch
      %58 = sbr.rel (0) target = $region33
    $region32: #{residual_block.1} parent=1 // pred_region
      %59 = dma.done [#allocation6], 1024
    $region33: #{residual_block.1} parent=1 // pred_fallthru
      _
    %v61 = vld [vmem:[#allocation2] sm:$0xff]
    %v62 = vpack.c.bf16 %v61, %v61
    %v63 = vld [vmem:[#allocation5] sm:$0xff]
    %v64 = vld [vmem:[#allocation5 + $0x8] sm:$0xff]
    %v65 = vld [vmem:[#allocation5 + $0x10] sm:$0xff]
    %v66 = vld [vmem:[#allocation5 + $0x18] sm:$0xff]
    %v67 = vld [vmem:[%s2] sm:$0x3]
    %v69 = vlaneseq
    %v70 = vshrl.u32 %v69, 7
    %v71 = vsub.s32 0, %v70
    %v72 = vrot.slane %v67, %v71
    %v73 = vlaneseq
    %v74 = vshrl.u32 %v73, 7
    %v75 = vsub.s32 1, %v74
    %v76 = vrot.slane %v67, %v75
    %v83 = vunpack.c.l.b16 %v63
    %v84 = vunpack.c.h.b16 %v63
    %v85 = vunpack.c.l.b16 %v64
    %v86 = vunpack.c.h.b16 %v64
    %v87 = vunpack.c.l.b16 %v65
    %v88 = vunpack.c.h.b16 %v65
    %v89 = vunpack.c.l.b16 %v66
    %v90 = vunpack.c.h.b16 %v66
    %v91 = vpack.c.b16 %v85, %v83
    %v92 = vpack.c.b16 %v86, %v84
    %v93 = vpack.c.b16 %v89, %v87
    %v94 = vpack.c.b16 %v90, %v88
    %vm99 = vcmask 261120
    %v101 = vsel %vm99, %v62, 0
    %103 = vmatprep.subr.bf16.mxu0 0
    %104 = vmatpush1.bf16.msra.mxu0 0
    %105 = vmatprep.subr.bf16.mxu0 0
    %106 = vmatpush1.bf16.msra.mxu0 0
    %107 = vmatprep.subr.bf16.mxu0 0
    %108 = vmatpush1.bf16.msra.mxu0 0
    %109 = vmatprep.subr.bf16.mxu0 0
    %110 = vmatpush1.bf16.msra.mxu0 0
    %111 = vmatprep.subr.bf16.mxu0 0
    %112 = vmatpush1.bf16.msra.mxu0 0
    %113 = vmatprep.subr.bf16.mxu0 0
    %114 = vmatpush1.bf16.msra.mxu0 0
    %115 = vmatprep.subr.bf16.mxu0 %v94
    %116 = vmatpush1.bf16.msra.mxu0 %v93
    %117 = vmatprep.subr.bf16.mxu0 %v92
    %118 = vmatpush1.bf16.msra.mxu0 %v91
    %119 = vmatprep.subr.bf16.mxu0 0
    %120 = vmatpush2.bf16.msra.mxu0 0
    %121 = vmatprep.subr.bf16.mxu0 0
    %122 = vmatpush2.bf16.msra.mxu0 0
    %123 = vmatprep.subr.bf16.mxu0 0
    %124 = vmatpush2.bf16.msra.mxu0 0
    %125 = vmatprep.subr.bf16.mxu0 0
    %126 = vmatpush2.bf16.msra.mxu0 0
    %127 = vmatprep.subr.bf16.mxu0 0
    %128 = vmatpush2.bf16.msra.mxu0 0
    %129 = vmatprep.subr.bf16.mxu0 0
    %130 = vmatpush2.bf16.msra.mxu0 0
    %131 = vmatprep.subr.bf16.mxu0 0
    %132 = vmatpush2.bf16.msra.mxu0 0
    %133 = vmatprep.subr.bf16.mxu0 0
    %134 = vmatpush2.bf16.msra.mxu0 0
    %135 = vmatprep.mubr.bf16.mxu0 0
    %136 = vmatmul.mubr.bf16.gmra.mxu0 %v101
    %v137 = vpop.f32.mrf.mxu0
    %v138 = vadd.f32 %v72, %v137
    %v139 = vpop.f32.mrf.mxu0
    %v140 = vadd.f32 %v76, %v139
    %v141 = vpop.f32.mrf.mxu0
    %v142 = vpop.f32.mrf.mxu0
    %143 = vdwg.mxu0
    %v144 = vmax.f32 %v138, 0.0
    %v145 = vpack.c.bf16 %v144, %v144
    %v146 = vld [vmem:[#allocation7] sm:$0xf]
    %v147 = vld [vmem:[#allocation7 + $0x4] sm:$0xf]
    %v148 = vld [vmem:[#allocation7 + $0x8] sm:$0xf]
    %v149 = vld [vmem:[#allocation7 + $0xc] sm:$0xf]
    %v150 = vld [vmem:[#allocation7 + $0x10] sm:$0xf]
    %v151 = vld [vmem:[#allocation7 + $0x14] sm:$0xf]
    %v152 = vld [vmem:[#allocation7 + $0x18] sm:$0xf]
    %v153 = vld [vmem:[#allocation7 + $0x1c] sm:$0xf]
    %v154 = vld [vmem:[#allocation7 + $0x20] sm:$0xf]
    %v155 = vld [vmem:[#allocation7 + $0x24] sm:$0xf]
    %v156 = vld [vmem:[#allocation7 + $0x28] sm:$0xf]
    %v157 = vld [vmem:[#allocation7 + $0x2c] sm:$0xf]
    %v158 = vld [vmem:[#allocation7 + $0x30] sm:$0xf]
    %v159 = vld [vmem:[#allocation7 + $0x34] sm:$0xf]
    %v160 = vld [vmem:[#allocation7 + $0x38] sm:$0xf]
    %v161 = vld [vmem:[#allocation7 + $0x3c] sm:$0xf]
    %v162 = vld [vmem:[%s4] sm:$0x1]
    %v164 = vlaneseq
    %v165 = vshrl.u32 %v164, 7
    %v166 = vsub.s32 0, %v165
    %v167 = vrot.slane %v162, %v166
    %v185 = vunpack.c.l.b16 %v146
    %v186 = vunpack.c.l.b16 %v147
    %v187 = vunpack.c.l.b16 %v148
    %v188 = vunpack.c.l.b16 %v149
    %v189 = vunpack.c.l.b16 %v150
    %v190 = vunpack.c.l.b16 %v151
    %v191 = vunpack.c.l.b16 %v152
    %v192 = vunpack.c.l.b16 %v153
    %v193 = vunpack.c.l.b16 %v154
    %v194 = vunpack.c.l.b16 %v155
    %v195 = vunpack.c.l.b16 %v156
    %v196 = vunpack.c.l.b16 %v157
    %v197 = vunpack.c.l.b16 %v158
    %v198 = vunpack.c.l.b16 %v159
    %v199 = vunpack.c.l.b16 %v160
    %v200 = vunpack.c.l.b16 %v161
    %v201 = vpack.c.b16 %v186, %v185
    %v202 = vpack.c.b16 %v188, %v187
    %v203 = vpack.c.b16 %v190, %v189
    %v204 = vpack.c.b16 %v192, %v191
    %v205 = vpack.c.b16 %v194, %v193
    %v206 = vpack.c.b16 %v196, %v195
    %v207 = vpack.c.b16 %v198, %v197
    %v208 = vpack.c.b16 %v200, %v199
    %217 = vmatprep.subr.bf16.mxu0 0
    %218 = vmatpush1.bf16.msra.mxu0 %v208
    %219 = vmatprep.subr.bf16.mxu0 0
    %220 = vmatpush1.bf16.msra.mxu0 %v207
    %221 = vmatprep.subr.bf16.mxu0 0
    %222 = vmatpush1.bf16.msra.mxu0 %v206
    %223 = vmatprep.subr.bf16.mxu0 0
    %224 = vmatpush1.bf16.msra.mxu0 %v205
    %225 = vmatprep.subr.bf16.mxu0 0
    %226 = vmatpush1.bf16.msra.mxu0 %v204
    %227 = vmatprep.subr.bf16.mxu0 0
    %228 = vmatpush1.bf16.msra.mxu0 %v203
    %229 = vmatprep.subr.bf16.mxu0 0
    %230 = vmatpush1.bf16.msra.mxu0 %v202
    %231 = vmatprep.subr.bf16.mxu0 0
    %232 = vmatpush1.bf16.msra.mxu0 %v201
    %233 = vmatprep.subr.bf16.mxu0 0
    %234 = vmatpush2.bf16.msra.mxu0 0
    %235 = vmatprep.subr.bf16.mxu0 0
    %236 = vmatpush2.bf16.msra.mxu0 0
    %237 = vmatprep.subr.bf16.mxu0 0
    %238 = vmatpush2.bf16.msra.mxu0 0
    %239 = vmatprep.subr.bf16.mxu0 0
    %240 = vmatpush2.bf16.msra.mxu0 0
    %241 = vmatprep.subr.bf16.mxu0 0
    %242 = vmatpush2.bf16.msra.mxu0 0
    %243 = vmatprep.subr.bf16.mxu0 0
    %244 = vmatpush2.bf16.msra.mxu0 0
    %245 = vmatprep.subr.bf16.mxu0 0
    %246 = vmatpush2.bf16.msra.mxu0 0
    %247 = vmatprep.subr.bf16.mxu0 0
    %248 = vmatpush2.bf16.msra.mxu0 0
    %249 = vmatprep.mubr.bf16.mxu0 0
    %250 = vmatmul.mubr.bf16.gmra.mxu0 %v145
    %v251 = vpop.f32.mrf.mxu0
    %v252 = vadd.f32 %v167, %v251
    %v253 = vpop.f32.mrf.mxu0
    %v254 = vpop.f32.mrf.mxu0
    %v255 = vpop.f32.mrf.mxu0
    %256 = vdwg.mxu0
    %v257 = vmax.f32 %v252, 0.0
    %v258 = vadd.f32 %v257, %v140
    %259 = vst [vmem:[#allocation8] sm:$0xff] %v258
    // Predicated region
    $region34: #{residual_block.1} parent=1 // pred_check
      _
    $region35: #{residual_block.1} parent=1 // pred_check_branch
      %261 = sbr.rel (0) target = $region37
    $region36: #{residual_block.1} parent=1 // pred_region
      %s263 = ssub.s32 128, 128
      %264 = vsyncadd [#allocation4], %s263
      %s266 = sshll.u32 [#allocation8], 4
      %s267 = int_to_ptr.vmem [resolvable:$true] %s266
      %269 = dma.vmem_to_hbm [thread:$0]  %s267, 128, %s5, [#allocation4]
    $region37: #{residual_block.1} parent=1 // pred_fallthru
      _
    // Predicated region
    $region38: #{residual_block.1} parent=1 // pred_check
      _
    $region39: #{residual_block.1} parent=1 // pred_check_branch
      %271 = sbr.rel (0) target = $region41
    $region40: #{residual_block.1} parent=1 // pred_region
      %272 = dma.done [#allocation4], 128
    $region41: #{residual_block.1} parent=1 // pred_fallthru
      _
    %273 = vsyncpa [#allocation3], 1
    %274 = vsyncpa [#allocation6], 1
    %275 = vsyncpa [#allocation4], 1

</llo_original>
